<compile_context>
chip_gen: v7x
topology: tpu7x:2x2x1
jax: 0.10.0
libtpu: 0.0.40
codegen_flags: <defaults>
</compile_context>

<pallas_src>
import functools
import math

import jax
import jax.numpy as jnp
from jax.experimental import pallas as pl
from jax.experimental.pallas import tpu as pltpu


def _spat_attn_kernel(x_ref, w_ref, gamma_ref, o_ref, t_ref, v_ref, *, denom_row):
    """One (batch element, query tile) of fused position attention.

    x_ref:     (1, CP, Np) f32  -- channels [x | ones | pad-indicator | 0...], lane-padded spatial
    w_ref:     (2*CP, CP) bf16  -- stacked [M_aug (QK bilinear, mask folded); Wv_aug (bias+ones row)]
    gamma_ref: (1,)        f32  -- SMEM scalar
    o_ref:     (1, CP, TQ) f32  -- rows >= C are garbage, sliced off by the wrapper
    t_ref:     (CP, Np)   bf16  -- VMEM scratch: cached key-side bilinear projection
    v_ref:     (CP, Np)   bf16  -- VMEM scratch: cached values (+ denominator ones row)
    """
    cp = x_ref.shape[1]
    np_ = x_ref.shape[2]
    tq = o_ref.shape[2]

    # ---- key/value side: once per batch element, cached across query tiles ----
    @pl.when(pl.program_id(1) == 0)
    def _():
        x_bf = x_ref[0].astype(jnp.bfloat16)                     # (CP, Np)
        # One fused MXU pass for both the QK bilinear projection and the values.
        tv = jax.lax.dot_general(
            w_ref[...], x_bf, (((1,), (0,)), ((), ())),
            preferred_element_type=jnp.float32)                  # (2*CP, Np) f32
        # The padded-key -1e30 bias is already folded into row `denom_row` of tv
        # via M_aug[ones_row, pad_row] (see wrapper) -- no masking ops needed here.
        t_ref[...] = tv[:cp].astype(jnp.bfloat16)
        v_ref[...] = tv[cp:].astype(jnp.bfloat16)

    # ---- query tile ----
    if tq == np_:
        xq = x_ref[0]                                            # single tile: no slice
    else:
        q0 = pl.multiple_of(pl.program_id(1) * tq, 128)
        xq = x_ref[0, :, pl.ds(q0, tq)]                          # (CP, TQ) f32

    # energy[i, j] = x_q_i^T M x_k_j. Cached t keeps its native stationary form
    # (contraction on sublanes); only the small (CP, TQ) query slice is the
    # transposed/staged operand.
    energy = jax.lax.dot_general(
        xq.astype(jnp.bfloat16), t_ref[...], (((0,), (0,)), ((), ())),
        preferred_element_type=jnp.float32)                      # (TQ, Np) f32

    # Numerically-stable unnormalized softmax over keys. Padded key columns carry
    # a -1e30 bias from the folded mask, so exp underflows to exactly 0 there.
    e_max = jnp.max(energy, axis=-1, keepdims=True)              # (TQ, 1)
    p = jnp.exp(energy - e_max).astype(jnp.bfloat16)             # (TQ, Np)

    # out_ext[c, i] = sum_j v_ext[c, j] * p[i, j]: lane-axis contraction on both
    # operands (A.B^T), output stays channel-major so stores are lane-dense.
    out_ext = jax.lax.dot_general(
        v_ref[...], p, (((1,), (1,)), ((), ())),
        preferred_element_type=jnp.float32)                      # (CP, TQ) f32

    # Row `denom_row` of out_ext is the softmax denominator (ones row of Wv_aug).
    # It is always > 0, including for padded query columns, so the divide is safe.
    l = out_ext[denom_row:denom_row + 1, :]                      # (1, TQ)
    scale = gamma_ref[0] / l                                     # exact f32, 1 vreg row

    # Residual uses the exact f32 input slice (x kept in f32 for this reason; the
    # MXU-only bf16 copies are made once per batch element above).
    o_ref[0] = out_ext * scale + xq


def spat_attn(x, wq, bq, wk, bk, wv, bv, gamma):
    """x: (B, C, H, W) f32; 1x1-conv weights as 2-D matrices (out, in); biases (out, 1);
    gamma shape (1,). Mirrors SpatAttn.forward."""
    B, C, H, W = x.shape
    N = H * W
    Np = pl.cdiv(N, 128) * 128                    # lane-dense spatial axis
    CP = ((C + 2 + 7) // 8) * 8                   # channels + ones + pad-ind, 8-aligned
    ones_row = C                                  # folded-bias / denominator channel
    pad_row = C + 1                               # padded-key indicator channel

    # Query tile: multiple of 128 dividing Np, capped so the two (TQ, Np) f32
    # intermediates stay ~<=16 MiB (safe for v7x's smaller VMEM).
    tq_cap = max(128, ((16 << 20) // (8 * Np)) // 128 * 128)
    TQ = math.gcd(Np, min(512, tq_cap))

    f32 = jnp.float32

    # Fused QK bilinear form (wrapper matmul at highest precision so wrapper error
    # does not stack on the in-kernel bf16 rounding), biases folded via the ones row.
    wq_aug = jnp.concatenate([wq, bq], axis=1)                    # (Cq, C+1)
    wk_aug = jnp.concatenate([wk, bk], axis=1)                    # (Cq, C+1)
    m = jax.lax.dot_general(wq_aug, wk_aug, (((0,), (0,)), ((), ())),
                            precision=jax.lax.Precision.HIGHEST)  # (C+1, C+1)
    m_aug = jnp.zeros((CP, CP), f32).at[:C + 1, :C + 1].set(m)
    if Np != N:
        # Padded-key mask folded into the bilinear form: every query's ones channel
        # (=1) times every padded key's indicator channel (=1) contributes -1e30.
        m_aug = m_aug.at[ones_row, pad_row].set(-1e30)

    # Value projection with bias folded in + a ones row producing softmax denominators.
    wv_aug = jnp.zeros((CP, CP), f32)
    wv_aug = wv_aug.at[:C, :C].set(wv)
    wv_aug = wv_aug.at[:C, ones_row].set(bv[:, 0])
    wv_aug = wv_aug.at[ones_row, ones_row].set(1.0)

    # Single stacked, pre-cast bf16 weight matrix -> one MXU pass in the kernel.
    w_comb = jnp.concatenate([m_aug, wv_aug], axis=0).astype(jnp.bfloat16)  # (2*CP, CP)

    # Padded / augmented input, built in one fused assignment (single HBM copy).
    x_aug = jnp.zeros((B, CP, Np), f32)
    x_aug = x_aug.at[:, :C, :N].set(x.reshape(B, C, N))
    x_aug = x_aug.at[:, ones_row, :].set(1.0)
    if Np != N:
        x_aug = x_aug.at[:, pad_row, N:].set(1.0)

    kernel = functools.partial(_spat_attn_kernel, denom_row=ones_row)

    out_p = pl.pallas_call(
        kernel,
        out_shape=jax.ShapeDtypeStruct((B, CP, Np), f32),
        grid_spec=pltpu.PrefetchScalarGridSpec(
            num_scalar_prefetch=0,
            grid=(B, Np // TQ),
            in_specs=[
                pl.BlockSpec((1, CP, Np), lambda b, q: (b, 0, 0)),     # x_aug (whole row of keys)
                pl.BlockSpec((2 * CP, CP), lambda b, q: (0, 0)),       # stacked weights
                pl.BlockSpec(memory_space=pltpu.MemorySpace.SMEM),     # gamma scalar
            ],
            out_specs=pl.BlockSpec((1, CP, TQ), lambda b, q: (b, 0, q)),
            scratch_shapes=[
                pltpu.VMEM((CP, Np), jnp.bfloat16),                    # cached key projection t
                pltpu.VMEM((CP, Np), jnp.bfloat16),                    # cached values (+ ones row)
            ],
        ),
        compiler_params=pltpu.CompilerParams(
            # b parallel (both v7x TensorCores busy at B=2); q sequential per b so the
            # key/value cache computed at q == 0 is valid for all later query tiles.
            dimension_semantics=("parallel", "arbitrary")),
    )(x_aug, w_comb, gamma)

    return out_p[:, :C, :N].reshape(B, C, H, W)


def spat_attn_ref(x, wq, bq, wk, bk, wv, bv, gamma):
    """Pure-JAX f32 reference mirroring the PyTorch SpatAttn.forward exactly."""
    B, C, H, W = x.shape
    N = H * W
    xf = x.reshape(B, C, N)
    q = jnp.einsum('oc,bcn->bon', wq, xf) + bq[None]       # (B, Cq, N)
    k = jnp.einsum('oc,bcn->bon', wk, xf) + bk[None]       # (B, Cq, N)
    v = jnp.einsum('oc,bcn->bon', wv, xf) + bv[None]       # (B, C,  N)
    energy = jnp.einsum('bci,bcj->bij', q, k)              # (B, N, N)
    attn = jax.nn.softmax(energy, axis=-1)
    out = jnp.einsum('bcj,bij->bci', v, attn)              # (B, C, N)
    out = gamma[0] * out + xf
    return out.reshape(B, C, H, W)


if __name__ == "__main__":
    # Shapes from SSNet_AEAE_IN.layer2 = SARes(inter_size=49, ratio=8) on 9x9
    # patches: C=49, Cq=49//8=6, N=81 (lane-padded to 128 inside the wrapper).
    B, C, H, W = 2, 49, 9, 9
    ratio = 8
    Cq = C // ratio

    key = jax.random.PRNGKey(0)
    kx, kq, kbq, kk, kbk, kv, kbv = jax.random.split(key, 7)

    x = jax.random.normal(kx, (B, C, H, W), dtype=jnp.float32)
    wq = 0.1 * jax.random.normal(kq, (Cq, C), dtype=jnp.float32)
    bq = 0.1 * jax.random.normal(kbq, (Cq, 1), dtype=jnp.float32)
    wk = 0.1 * jax.random.normal(kk, (Cq, C), dtype=jnp.float32)
    bk = 0.1 * jax.random.normal(kbk, (Cq, 1), dtype=jnp.float32)
    wv = 0.1 * jax.random.normal(kv, (C, C), dtype=jnp.float32)
    bv = 0.1 * jax.random.normal(kbv, (C, 1), dtype=jnp.float32)
    # PyTorch initializes gamma to 0 (out == x); use a nonzero value so the
    # attention path is actually exercised.
    gamma = jnp.array([0.5], dtype=jnp.float32)

    out = jax.block_until_ready(spat_attn(x, wq, bq, wk, bk, wv, bv, gamma))
    ref = spat_attn_ref(x, wq, bq, wk, bk, wv, bv, gamma)

    assert out.shape == (B, C, H, W)
    # bf16 MXU inputs (f32 accumulation) -> loosened tolerance vs the pure-f32 reference.
    assert jnp.allclose(out, ref, atol=5e-2, rtol=5e-2), "mismatch vs reference"

    print("KERNEL_OK")
</pallas_src>

<mosaic_0001>
module attributes {stable_mosaic.version = 11 : i64} {
  func.func @_spat_attn_kernel(%arg0: i32, %arg1: i32, %arg2: memref<1x56x128xf32, #tpu.memory_space<vmem>>, %arg3: memref<112x56xbf16, #tpu.memory_space<vmem>>, %arg4: memref<1xf32, #tpu.memory_space<smem>>, %arg5: memref<1x56x128xf32, #tpu.memory_space<vmem>>, %arg6: memref<56x128xbf16, #tpu.memory_space<vmem>>, %arg7: memref<56x128xbf16, #tpu.memory_space<vmem>>) attributes {dimension_semantics = [#tpu.dimension_semantics<parallel>, #tpu.dimension_semantics<arbitrary>], iteration_bounds = array<i64: 2, 1>, scalar_prefetch = 0 : i64, scratch_operands = 2 : i64, tpu.core_type = #tpu.core_type<tc>, window_params = [{transform_indices = @transform_0, window_bounds = array<i64: 1, 56, 128>}, {pipeline_mode = #tpu.pipeline_mode<synchronous>, transform_indices = @transform_1, window_bounds = array<i64: 112, 56>}, {transform_indices = @transform_2, window_bounds = array<i64: 1>}, {transform_indices = @transform_3, window_bounds = array<i64: 1, 56, 128>}]} {
    %c0_i32 = arith.constant 0 : i32
    %0 = arith.cmpi eq, %arg1, %c0_i32 : i32
    %1 = arith.extui %0 : i1 to i32
    %c0_i32_0 = arith.constant 0 : i32
    %2 = arith.cmpi ne, %1, %c0_i32_0 : i32
    scf.if %2 {
      %c0_13 = arith.constant 0 : index
      %c0_14 = arith.constant 0 : index
      %c0_15 = arith.constant 0 : index
      %26 = vector.load %arg2[%c0_13, %c0_14, %c0_15] : memref<1x56x128xf32, #tpu.memory_space<vmem>>, vector<1x56x128xf32>
      %27 = vector.shape_cast %26 : vector<1x56x128xf32> to vector<56x128xf32>
      %28 = arith.truncf %27 : vector<56x128xf32> to vector<56x128xbf16>
      %c0_16 = arith.constant 0 : index
      %c0_17 = arith.constant 0 : index
      %29 = vector.load %arg3[%c0_16, %c0_17] : memref<112x56xbf16, #tpu.memory_space<vmem>>, vector<112x56xbf16>
      %cst_18 = arith.constant dense<0.000000e+00> : vector<112x128xf32>
      %30 = tpu.matmul %29, %28, %cst_18 {dimension_numbers = #tpu.dot_dimension_numbers<[1], [0], [0], [1], [0, 0, 1, 1], [], []>} : vector<112x56xbf16>, vector<56x128xbf16>, vector<112x128xf32> -> vector<112x128xf32>
      %31 = vector.extract_strided_slice %30 {offsets = [0, 0], sizes = [56, 128], strides = [1, 1]} : vector<112x128xf32> to vector<56x128xf32>
      %32 = arith.truncf %31 : vector<56x128xf32> to vector<56x128xbf16>
      %c0_19 = arith.constant 0 : index
      %c0_20 = arith.constant 0 : index
      %33 = vector.load %arg6[%c0_19, %c0_20] : memref<56x128xbf16, #tpu.memory_space<vmem>>, vector<56x128xbf16>
      tpu.vector_store %arg6[%c0_19, %c0_20], %32 {strides = array<i32>} : memref<56x128xbf16, #tpu.memory_space<vmem>>, vector<56x128xbf16>,
      %34 = vector.extract_strided_slice %30 {offsets = [56, 0], sizes = [56, 128], strides = [1, 1]} : vector<112x128xf32> to vector<56x128xf32>
      %35 = arith.truncf %34 : vector<56x128xf32> to vector<56x128xbf16>
      %c0_21 = arith.constant 0 : index
      %c0_22 = arith.constant 0 : index
      %36 = vector.load %arg7[%c0_21, %c0_22] : memref<56x128xbf16, #tpu.memory_space<vmem>>, vector<56x128xbf16>
      tpu.vector_store %arg7[%c0_21, %c0_22], %35 {strides = array<i32>} : memref<56x128xbf16, #tpu.memory_space<vmem>>, vector<56x128xbf16>,
    } else {
    }
    %c0 = arith.constant 0 : index
    %c0_1 = arith.constant 0 : index
    %c0_2 = arith.constant 0 : index
    %3 = vector.load %arg2[%c0, %c0_1, %c0_2] : memref<1x56x128xf32, #tpu.memory_space<vmem>>, vector<1x56x128xf32>
    %4 = vector.shape_cast %3 : vector<1x56x128xf32> to vector<56x128xf32>
    %5 = arith.truncf %4 : vector<56x128xf32> to vector<56x128xbf16>
    %c0_3 = arith.constant 0 : index
    %c0_4 = arith.constant 0 : index
    %6 = vector.load %arg6[%c0_3, %c0_4] : memref<56x128xbf16, #tpu.memory_space<vmem>>, vector<56x128xbf16>
    %cst = arith.constant dense<0.000000e+00> : vector<128x128xf32>
    %7 = tpu.matmul %5, %6, %cst {dimension_numbers = #tpu.dot_dimension_numbers<[0], [0], [1], [1], [0, 1, 1, 1], [], []>} : vector<56x128xbf16>, vector<56x128xbf16>, vector<128x128xf32> -> vector<128x128xf32>
    %cst_5 = arith.constant dense<0xFF800000> : vector<128xf32>
    %8 = vector.multi_reduction <maximumf>, %7, %cst_5 [1] : vector<128x128xf32> to vector<128xf32>
    %9 = vector.shape_cast %8 : vector<128xf32> to vector<128x1xf32>
    %10 = vector.broadcast %9 : vector<128x1xf32> to vector<128x128xf32>
    %11 = arith.subf %7, %10 : vector<128x128xf32>
    %12 = math.exp %11 : vector<128x128xf32>
    %13 = arith.truncf %12 : vector<128x128xf32> to vector<128x128xbf16>
    %c0_6 = arith.constant 0 : index
    %c0_7 = arith.constant 0 : index
    %14 = vector.load %arg7[%c0_6, %c0_7] : memref<56x128xbf16, #tpu.memory_space<vmem>>, vector<56x128xbf16>
    %cst_8 = arith.constant dense<0.000000e+00> : vector<56x128xf32>
    %15 = tpu.matmul %14, %13, %cst_8 {dimension_numbers = #tpu.dot_dimension_numbers<[1], [1], [0], [0], [0, 0, 1, 0], [], []>} : vector<56x128xbf16>, vector<128x128xbf16>, vector<56x128xf32> -> vector<56x128xf32>
    %16 = vector.extract_strided_slice %15 {offsets = [49, 0], sizes = [1, 128], strides = [1, 1]} : vector<56x128xf32> to vector<1x128xf32>
    %c0_9 = arith.constant 0 : index
    %17 = memref.load %arg4[%c0_9] : memref<1xf32, #tpu.memory_space<smem>>
    %18 = vector.broadcast %17 : f32 to vector<1x128xf32>
    %19 = arith.divf %18, %16 : vector<1x128xf32>
    %20 = vector.broadcast %19 : vector<1x128xf32> to vector<56x128xf32>
    %21 = arith.mulf %15, %20 : vector<56x128xf32>
    %22 = arith.addf %21, %4 : vector<56x128xf32>
    %c0_10 = arith.constant 0 : index
    %c0_11 = arith.constant 0 : index
    %c0_12 = arith.constant 0 : index
    %23 = vector.load %arg5[%c0_10, %c0_11, %c0_12] : memref<1x56x128xf32, #tpu.memory_space<vmem>>, vector<1x56x128xf32>
    %24 = vector.shape_cast %23 : vector<1x56x128xf32> to vector<56x128xf32>
    %25 = vector.shape_cast %22 : vector<56x128xf32> to vector<1x56x128xf32>
    tpu.vector_store %arg5[%c0_10, %c0_11, %c0_12], %25 {strides = array<i32>} : memref<1x56x128xf32, #tpu.memory_space<vmem>>, vector<1x56x128xf32>,
    return
  }
  func.func @transform_0(%arg0: i32, %arg1: i32) -> (i32, i32, i32) {
    %c0_i32 = arith.constant 0 : i32
    %c0_i32_0 = arith.constant 0 : i32
    %c0_i32_1 = arith.constant 0 : i32
    return %arg0, %c0_i32, %c0_i32_0 : i32, i32, i32
  }
  func.func @transform_1(%arg0: i32, %arg1: i32) -> (i32, i32) {
    %c0_i32 = arith.constant 0 : i32
    %c0_i32_0 = arith.constant 0 : i32
    %c0_i32_1 = arith.constant 0 : i32
    return %c0_i32, %c0_i32_0 : i32, i32
  }
  func.func @transform_2(%arg0: i32, %arg1: i32) -> i32 {
    %c0_i32 = arith.constant 0 : i32
    %c0_i32_0 = arith.constant 0 : i32
    return %c0_i32 : i32
  }
  func.func @transform_3(%arg0: i32, %arg1: i32) -> (i32, i32, i32) {
    %c0_i32 = arith.constant 0 : i32
    %c0_i32_0 = arith.constant 0 : i32
    return %arg0, %c0_i32, %arg1 : i32, i32, i32
  }
}

</mosaic_0001>

<llo_original>
// kernel: tpu_custom_call.1
$region0: #{tpu_custom_call.1}
  #allocation0 [shape = 'u32[]', space=smem, size = 0x4, offset = 0x4, fixed_abs, tag = 'smem constant byte address 0x4 - core index']
  #allocation1 [shape = 'u32[144,128]{1,0:T(1,128)}', space=vmem, size = 0x12000, scoped, tag = 'internal scratch']
  #allocation2 [shape = 'bf16[56,128]{1,0:T(8,128)(2,1)}', space=vmem, size = 0x3800, scoped, tag = 'scratch operand']
  #allocation3 [shape = 'bf16[56,128]{1,0:T(8,128)(2,1)}', space=vmem, size = 0x3800, scoped, tag = 'scratch operand']
  #allocation4 [shape = 'f32[1]{0:T(128)S(6)}', space=smem, size = 0x200, scoped, tag = 'scoped memory for tpu_custom_call.1']
  %s0 = inlined_call_operand.hbm [shape: f32[2,56,128], index: 0, kind: input, shape index: {}]
  %s1 = inlined_call_operand.vmem [shape: bf16[112,56], index: 1, kind: input, shape index: {}]
  %s2 = inlined_call_operand.<no memory space> [shape: f32[1], index: 2, kind: input, shape index: {}]
  %s3 = inlined_call_operand.hbm [shape: f32[2,56,128], index: 3, kind: output, shape index: {}]
  %s4 = sld [smem:[#allocation0]]
  $region53: #{tpu_custom_call.1} parent=0
    _
  %s6 = ssub.s32 1, %s4
  %s7 = scalar_select 0, %s6, %s4
  %8 = sst [smem:[#allocation4]] %s2
  $region1: #{tpu_custom_call.1} parent=0
    #allocation5 [shape = 'u8[57344]{0}', space=vmem, size = 0xe000, scoped, tag = 'input window, operand 0']
    #allocation6 [shape = 's32[2]{0}', space=sflag, size = 0x8, scoped, tag = 'scoped memory for tpu_custom_call.1']
    #allocation7 [shape = 's32[2]{0}', space=sflag, size = 0x8, scoped, tag = 'scoped memory for tpu_custom_call.1']
    #allocation8 [shape = 'u8[57344]{0}', space=vmem, size = 0xe000, scoped, tag = 'output window, operand 0']
    %9 = vsyncpa [#allocation6], 0
    %s10 = scalar_lea.sflag [#allocation6], 1
    %11 = vsyncpa %s10, 0
    %12 = vsyncpa [#allocation7], 0
    %s13 = scalar_lea.sflag [#allocation7], 1
    %14 = vsyncpa %s13, 0
    loop: start=0, step=1, limit=4
    $region2: #{tpu_custom_call.1} parent=1 // loop_pre_header
      _
    $region3: #{tpu_custom_call.1} parent=1 // loop_header
      %s16 = sphi 0, %s20
      %p17 = scmp.ge.s32.totalorder %s16, 4
      %s23 = sphi 0, %s35
      %s24 = sphi 0, %s31
      %s25 = sphi 0, %s23
      %s26 = sphi 0, %s24
      %s27 = sphi 0, %s25
      %s28 = sphi 0, %s26
      %s38 = sphi 0, %s40
      %s41 = sphi 0, %s38
      %s42 = sphi 0, %s41
      %s58 = sphi 0, %s42
      %s62 = sphi 0, %s62
      %s64 = sphi 0, %s62
      %s65 = sphi 0, %s64
      %s79 = sphi 0, %s65
      %s83 = sphi 0, %s83
      %s85 = sphi 0, %s83
      %s86 = sphi 0, %s85
      %s100 = sphi 0, %s86
      %s108 = sphi 0, %s110
      %s111 = sphi 0, %s108
      %s112 = sphi 0, %s111
      %s128 = sphi 0, %s112
    $region4: #{tpu_custom_call.1} parent=1 // loop_header_branch
      %19 = sbr.rel (%p17) target = $region8
    $region5: #{tpu_custom_call.1} parent=1 // loop_body
      %s21 = ssub.s32 %s16, 1
      %s22 = ssub.s32 %s16, 2
      %s29 = sadd.s32 1, %s24
      %p30 = scmp.ge.s32.totalorder %s29, 1
      %s31 = scalar_select %p30, 0, %s29
      %s32 = sadd.s32 1, %s23
      %s33 = scalar_select %p30, %s32, %s23
      %p34 = scmp.ge.s32.totalorder %s33, 2
      %s35 = scalar_select %p34, 0, %s33
      %s36 = ssub.s32 %s23, %s35
      %p37 = scmp.eq.s32.totalorder %s36, 0
      %s39 = sadd.s32 %s38, 1
      %s40 = scalar_select %p37, %s38, %s39
      %p43 = pneg %p37
      %p44 = scmp.eq.s32.totalorder %s16, 1
      %p45 = por %p43, %p44
      %p46 = scmp.ne.s32.totalorder %s38, %s41
      %p47 = scmp.eq.s32.totalorder %s16, 0
      %p48 = por %p46, %p47
      %p49 = scmp.ne.s32.totalorder %s38, %s41
      %p50 = scmp.eq.s32.totalorder %s21, 1
      %p51 = por %p49, %p50
      %p52 = scmp.ne.s32.totalorder %s41, %s42
      %p53 = scmp.eq.s32.totalorder %s21, 0
      %p54 = por %p52, %p53
      %p55 = scmp.ne.s32.totalorder %s41, %s42
      %p56 = scmp.eq.s32.totalorder %s22, 1
      %p57 = por %p55, %p56
      %p59 = scmp.ne.s32.totalorder %s42, %s58
      %p60 = scmp.eq.s32.totalorder %s22, 0
      %p61 = por %p59, %p60
      %s63 = sadd.s32 %s62, 1
      %p66 = scmp.eq.s32.totalorder %s16, 1
      %p67 = scmp.ne.s32.totalorder %s62, %s64
      %p68 = scmp.eq.s32.totalorder %s16, 0
      %p69 = por %p67, %p68
      %p70 = scmp.ne.s32.totalorder %s62, %s64
      %p71 = scmp.eq.s32.totalorder %s21, 1
      %p72 = por %p70, %p71
      %p73 = scmp.ne.s32.totalorder %s64, %s65
      %p74 = scmp.eq.s32.totalorder %s21, 0
      %p75 = por %p73, %p74
      %p76 = scmp.ne.s32.totalorder %s64, %s65
      %p77 = scmp.eq.s32.totalorder %s22, 1
      %p78 = por %p76, %p77
      %p80 = scmp.ne.s32.totalorder %s65, %s79
      %p81 = scmp.eq.s32.totalorder %s22, 0
      %p82 = por %p80, %p81
      %s84 = sadd.s32 %s83, 1
      %p87 = scmp.eq.s32.totalorder %s16, 1
      %p88 = scmp.ne.s32.totalorder %s83, %s85
      %p89 = scmp.eq.s32.totalorder %s16, 0
      %p90 = por %p88, %p89
      %p91 = scmp.ne.s32.totalorder %s83, %s85
      %p92 = scmp.eq.s32.totalorder %s21, 1
      %p93 = por %p91, %p92
      %p94 = scmp.ne.s32.totalorder %s85, %s86
      %p95 = scmp.eq.s32.totalorder %s21, 0
      %p96 = por %p94, %p95
      %p97 = scmp.ne.s32.totalorder %s85, %s86
      %p98 = scmp.eq.s32.totalorder %s22, 1
      %p99 = por %p97, %p98
      %p101 = scmp.ne.s32.totalorder %s86, %s100
      %p102 = scmp.eq.s32.totalorder %s22, 0
      %p103 = por %p101, %p102
      %s104 = ssub.s32 %s23, %s35
      %s105 = ssub.s32 %s24, %s31
      %s106 = sor.u32 %s104, %s105
      %p107 = scmp.eq.s32.totalorder %s106, 0
      %s109 = sadd.s32 %s108, 1
      %s110 = scalar_select %p107, %s108, %s109
      %p113 = pneg %p107
      %p114 = scmp.eq.s32.totalorder %s16, 1
      %p115 = por %p113, %p114
      %p116 = scmp.ne.s32.totalorder %s108, %s111
      %p117 = scmp.eq.s32.totalorder %s16, 0
      %p118 = por %p116, %p117
      %p119 = scmp.ne.s32.totalorder %s108, %s111
      %p120 = scmp.eq.s32.totalorder %s21, 1
      %p121 = por %p119, %p120
      %p122 = scmp.ne.s32.totalorder %s111, %s112
      %p123 = scmp.eq.s32.totalorder %s21, 0
      %p124 = por %p122, %p123
      %p125 = scmp.ne.s32.totalorder %s111, %s112
      %p126 = scmp.eq.s32.totalorder %s22, 1
      %p127 = por %p125, %p126
      %p129 = scmp.ne.s32.totalorder %s112, %s128
      %p130 = scmp.eq.s32.totalorder %s22, 0
      %p131 = por %p129, %p130
      %p132 = scmp.le.s32.totalorder 1, %s16
      %p133 = scmp.lt.s32.totalorder %s16, 3
      %p134 = pnand %p132, %p133
      %p135 = pneg %p134
      // Predicated region
      $region9: #{tpu_custom_call.1} parent=5 // pred_check
        _
      $region10: #{tpu_custom_call.1} parent=5 // pred_check_branch
        %137 = sbr.rel (%p134) target = $region12
      $region11: #{tpu_custom_call.1} parent=5 // pred_region
        %s138 = ssub.s32 %s16, 1
        // Predicated region
        $region13: #{tpu_custom_call.1} parent=11 // pred_check
          %p139 = pneg %p75
        $region14: #{tpu_custom_call.1} parent=11 // pred_check_branch
          %141 = sbr.rel (%p139) target = $region16
        $region15: #{tpu_custom_call.1} parent=11 // pred_region
          _
        $region16: #{tpu_custom_call.1} parent=11 // pred_fallthru
          _
        // Predicated region
        $region17: #{tpu_custom_call.1} parent=11 // pred_check
          %p142 = pneg %p96
        $region18: #{tpu_custom_call.1} parent=11 // pred_check_branch
          %144 = sbr.rel (%p142) target = $region20
        $region19: #{tpu_custom_call.1} parent=11 // pred_region
          _
        $region20: #{tpu_custom_call.1} parent=11 // pred_fallthru
          _
      $region12: #{tpu_custom_call.1} parent=5 // pred_fallthru
        _
      %p145 = scmp.lt.s32.totalorder %s16, 2
      // Predicated region
      $region21: #{tpu_custom_call.1} parent=5 // pred_check
        %p146 = pneg %p145
      $region22: #{tpu_custom_call.1} parent=5 // pred_check_branch
        %148 = sbr.rel (%p146) target = $region24
      $region23: #{tpu_custom_call.1} parent=5 // pred_region
        // Predicated region
        $region25: #{tpu_custom_call.1} parent=23 // pred_check
          %p149 = pneg %p48
        $region26: #{tpu_custom_call.1} parent=23 // pred_check_branch
          %151 = sbr.rel (%p149) target = $region28
        $region27: #{tpu_custom_call.1} parent=23 // pred_region
          %s152 = sand.u32 %s38, 1
          %s153 = scalar_lea.sflag [#allocation6], %s152
          %s154 = sand.u32 %s38, 1
          %s155 = smul.addr %s154, 56
          %s156 = scalar_lea.vmem [#allocation5], %s155
          %s158 = ssub.s32 896, 896
          %159 = vsyncadd %s153, %s158
          %s160 = smul.addr %s23, 7
          %s161 = smul.addr %s160, 128
          %s162 = scalar_lea.hbm %s0, %s161
          %s163 = sshll.u32 %s156, 4
          %s164 = int_to_ptr.vmem [resolvable:$true] %s163
          %169 = dma.hbm_to_vmem [thread:$0]  %s162, 896, %s164, %s153, 128, 128, 8
        $region28: #{tpu_custom_call.1} parent=23 // pred_fallthru
          _
      $region24: #{tpu_custom_call.1} parent=5 // pred_fallthru
        _
      %p170 = scmp.le.s32.totalorder 1, %s16
      %p171 = scmp.lt.s32.totalorder %s16, 3
      %p172 = pnand %p170, %p171
      %p173 = pneg %p172
      // Predicated region
      $region29: #{tpu_custom_call.1} parent=5 // pred_check
        _
      $region30: #{tpu_custom_call.1} parent=5 // pred_check_branch
        %175 = sbr.rel (%p172) target = $region32
      $region31: #{tpu_custom_call.1} parent=5 // pred_region
        %s176 = ssub.s32 %s16, 1
        %s177 = sand.u32 %s41, 1
        %s178 = scalar_lea.sflag [#allocation6], %s177
        %s179 = sand.u32 %s41, 1
        %s180 = smul.addr %s179, 56
        %s181 = scalar_lea.vmem [#allocation5], %s180
        // Predicated region
        $region33: #{tpu_custom_call.1} parent=31 // pred_check
          %p182 = pneg %p54
        $region34: #{tpu_custom_call.1} parent=31 // pred_check_branch
          %184 = sbr.rel (%p182) target = $region36
        $region35: #{tpu_custom_call.1} parent=31 // pred_region
          %185 = dma.done %s178, 896
        $region36: #{tpu_custom_call.1} parent=31 // pred_fallthru
          _
        %s186 = sand.u32 %s41, 1
        %s187 = scalar_lea.sflag [#allocation6], %s186
        %s188 = sand.u32 %s41, 1
        %s189 = smul.addr %s188, 56
        %s190 = scalar_lea.vmem [#allocation5], %s189
        %p191 = pneg %p54
        %p192 = pneg %p51
        %p193 = pneg %p75
        %p194 = pneg %p72
        %p195 = pneg %p96
        %p196 = pneg %p93
        %p197 = pneg %p124
        %p198 = pneg %p121
        %s199 = sand.u32 %s111, 1
        %s200 = scalar_lea.sflag [#allocation7], %s199
        %s201 = sand.u32 %s111, 1
        %s202 = smul.addr %s201, 56
        %s203 = scalar_lea.vmem [#allocation8], %s202
        %p205 = scmp.eq.s32.totalorder %s26, 0
        // Predicated region
        $region37: #{tpu_custom_call.1} parent=31 // pred_check
          %p206 = pneg %p205
        $region38: #{tpu_custom_call.1} parent=31 // pred_check_branch
          %208 = sbr.rel (%p206) target = $region40
        $region39: #{tpu_custom_call.1} parent=31 // pred_region
          %v209 = vld [vmem:[%s181] sm:$0xff]
          %v210 = vld [vmem:[%s181 + $0x8] sm:$0xff]
          %v211 = vld [vmem:[%s181 + $0x10] sm:$0xff]
          %v212 = vld [vmem:[%s181 + $0x18] sm:$0xff]
          %v213 = vld [vmem:[%s181 + $0x20] sm:$0xff]
          %v214 = vld [vmem:[%s181 + $0x28] sm:$0xff]
          %v215 = vld [vmem:[%s181 + $0x30] sm:$0xff]
          %v216 = vpack.c.bf16 %v210, %v209
          %v217 = vpack.c.bf16 %v212, %v211
          %v218 = vpack.c.bf16 %v214, %v213
          %v219 = vpack.c.bf16 %v215, %v215
          %v220 = vld [vmem:[%s1] sm:$0xf]
          %v221 = vld [vmem:[%s1 + $0x4] sm:$0xf]
          %v222 = vld [vmem:[%s1 + $0x8] sm:$0xf]
          %v223 = vld [vmem:[%s1 + $0xc] sm:$0xf]
          %v224 = vld [vmem:[%s1 + $0x10] sm:$0xf]
          %v225 = vld [vmem:[%s1 + $0x14] sm:$0xf]
          %v226 = vld [vmem:[%s1 + $0x18] sm:$0xf]
          %v227 = vld [vmem:[%s1 + $0x1c] sm:$0xf]
          %v228 = vld [vmem:[%s1 + $0x20] sm:$0xf]
          %v229 = vld [vmem:[%s1 + $0x24] sm:$0xf]
          %v230 = vld [vmem:[%s1 + $0x28] sm:$0xf]
          %v231 = vld [vmem:[%s1 + $0x2c] sm:$0xf]
          %v232 = vld [vmem:[%s1 + $0x30] sm:$0xf]
          %v233 = vld [vmem:[%s1 + $0x34] sm:$0xf]
          %v248 = vunpack.c.l.b16 %v220
          %v249 = vunpack.c.l.b16 %v221
          %v250 = vunpack.c.l.b16 %v222
          %v251 = vunpack.c.l.b16 %v223
          %v252 = vunpack.c.l.b16 %v224
          %v253 = vunpack.c.l.b16 %v225
          %v254 = vunpack.c.l.b16 %v226
          %v255 = vunpack.c.l.b16 %v227
          %v256 = vunpack.c.l.b16 %v228
          %v257 = vunpack.c.l.b16 %v229
          %v258 = vunpack.c.l.b16 %v230
          %v259 = vunpack.c.l.b16 %v231
          %v260 = vunpack.c.l.b16 %v232
          %v261 = vunpack.c.l.b16 %v233
          %v262 = vpack.c.b16 %v249, %v248
          %v263 = vpack.c.b16 %v251, %v250
          %v264 = vpack.c.b16 %v253, %v252
          %v265 = vpack.c.b16 %v255, %v254
          %v266 = vpack.c.b16 %v257, %v256
          %v267 = vpack.c.b16 %v259, %v258
          %v268 = vpack.c.b16 %v261, %v260
          %vm269 = vcmask 457728
          %v271 = vsel %vm269, %v262, 0
          %v274 = vsel %vm269, %v263, 0
          %v277 = vsel %vm269, %v264, 0
          %v280 = vsel %vm269, %v265, 0
          %v283 = vsel %vm269, %v266, 0
          %v286 = vsel %vm269, %v267, 0
          %v289 = vsel %vm269, %v268, 0
          %vm291 = vcmask 1043456
          %v293 = vsel %vm291, %v219, 0
          %295 = vmatprep.subr.bf16.mxu0 0
          %296 = vmatpush1.bf16.msra.mxu0 %v216
          %297 = vmatprep.subr.bf16.mxu0 0
          %298 = vmatpush1.bf16.msra.mxu0 %v217
          %299 = vmatprep.subr.bf16.mxu0 0
          %300 = vmatpush1.bf16.msra.mxu0 %v218
          %301 = vmatprep.subr.bf16.mxu0 0
          %302 = vmatpush1.bf16.msra.mxu0 %v293
          %303 = vmatprep.subr.bf16.mxu0 0
          %304 = vmatpush1.bf16.msra.mxu0 0
          %305 = vmatprep.subr.bf16.mxu0 0
          %306 = vmatpush1.bf16.msra.mxu0 0
          %307 = vmatprep.subr.bf16.mxu0 0
          %308 = vmatpush1.bf16.msra.mxu0 0
          %309 = vmatprep.subr.bf16.mxu0 0
          %310 = vmatpush1.bf16.msra.mxu0 0
          %311 = vmatprep.subr.bf16.mxu0 0
          %312 = vmatpush1.bf16.msra.mxu0 0
          %313 = vmatprep.subr.bf16.mxu0 0
          %314 = vmatpush1.bf16.msra.mxu0 0
          %315 = vmatprep.subr.bf16.mxu0 0
          %316 = vmatpush1.bf16.msra.mxu0 0
          %317 = vmatprep.subr.bf16.mxu0 0
          %318 = vmatpush1.bf16.msra.mxu0 0
          %319 = vmatprep.subr.bf16.mxu0 0
          %320 = vmatpush1.bf16.msra.mxu0 0
          %321 = vmatprep.subr.bf16.mxu0 0
          %322 = vmatpush1.bf16.msra.mxu0 0
          %323 = vmatprep.subr.bf16.mxu0 0
          %324 = vmatpush1.bf16.msra.mxu0 0
          %325 = vmatprep.subr.bf16.mxu0 0
          %326 = vmatpush1.bf16.msra.mxu0 0
          %327 = vmatprep.mubr.bf16.mxu0 0
          %328 = vmatmul.mubr.bf16.gmra.mrb[0].mxu0 %v271
          %v329 = vpop.f32.mrb[0].mxu0
          %v330 = vadd.f32 0.0, %v329
          %v331 = vpop.f32.mrb[0].mxu0
          %v332 = vpop.f32.mrb[0].mxu0
          %v333 = vadd.f32 0.0, %v332
          %v334 = vpop.f32.mrb[0].mxu0
          %335 = vmatprep.mubr.bf16.mxu0 0
          %336 = vmatmul.mubr.bf16.gmra.mrb[0].mxu0 %v274
          %v337 = vpop.f32.mrb[0].mxu0
          %v338 = vadd.f32 0.0, %v337
          %v339 = vpop.f32.mrb[0].mxu0
          %v340 = vpop.f32.mrb[0].mxu0
          %v341 = vadd.f32 0.0, %v340
          %v342 = vpop.f32.mrb[0].mxu0
          %343 = vmatprep.mubr.bf16.mxu0 0
          %344 = vmatmul.mubr.bf16.gmra.mrb[0].mxu0 %v277
          %v345 = vpop.f32.mrb[0].mxu0
          %v346 = vadd.f32 0.0, %v345
          %v347 = vpop.f32.mrb[0].mxu0
          %v348 = vpop.f32.mrb[0].mxu0
          %v349 = vadd.f32 0.0, %v348
          %v350 = vpop.f32.mrb[0].mxu0
          %351 = vmatprep.mubr.bf16.mxu0 0
          %352 = vmatmul.mubr.bf16.gmra.mrb[0].mxu0 %v280
          %v353 = vpop.f32.mrb[0].mxu0
          %v354 = vadd.f32 0.0, %v353
          %v355 = vpop.f32.mrb[0].mxu0
          %v356 = vpop.f32.mrb[0].mxu0
          %v357 = vadd.f32 0.0, %v356
          %v358 = vpop.f32.mrb[0].mxu0
          %359 = vmatprep.mubr.bf16.mxu0 0
          %360 = vmatmul.mubr.bf16.gmra.mrb[0].mxu0 %v283
          %v361 = vpop.f32.mrb[0].mxu0
          %v362 = vadd.f32 0.0, %v361
          %v363 = vpop.f32.mrb[0].mxu0
          %v364 = vpop.f32.mrb[0].mxu0
          %v365 = vadd.f32 0.0, %v364
          %v366 = vpop.f32.mrb[0].mxu0
          %367 = vmatprep.mubr.bf16.mxu0 0
          %368 = vmatmul.mubr.bf16.gmra.mrb[0].mxu0 %v286
          %v369 = vpop.f32.mrb[0].mxu0
          %v370 = vadd.f32 0.0, %v369
          %v371 = vpop.f32.mrb[0].mxu0
          %v372 = vpop.f32.mrb[0].mxu0
          %v373 = vadd.f32 0.0, %v372
          %v374 = vpop.f32.mrb[0].mxu0
          %375 = vmatprep.mubr.bf16.mxu0 0
          %376 = vmatmul.mubr.bf16.gmra.mrb[0].mxu0 %v289
          %v377 = vpop.f32.mrb[0].mxu0
          %v378 = vadd.f32 0.0, %v377
          %v379 = vpop.f32.mrb[0].mxu0
          %v380 = vpop.f32.mrb[0].mxu0
          %v381 = vadd.f32 0.0, %v380
          %v382 = vpop.f32.mrb[0].mxu0
          %383 = vdwg.mxu0
          %v384 = vpack.c.bf16 %v333, %v330
          %v385 = vpack.c.bf16 %v341, %v338
          %v386 = vpack.c.bf16 %v349, %v346
          %v387 = vpack.c.bf16 %v354, %v354
          %v392 = vunpack.c.l.b16 %v384
          %v393 = vunpack.c.h.b16 %v384
          %v394 = vunpack.c.l.b16 %v385
          %v395 = vunpack.c.h.b16 %v385
          %v396 = vunpack.c.l.b16 %v386
          %v397 = vunpack.c.h.b16 %v386
          %v398 = vunpack.c.l.b16 %v387
          %v399 = vpack.c.b16 %v392, %v392
          %v400 = vpack.c.b16 %v393, %v393
          %v401 = vpack.c.b16 %v394, %v394
          %v402 = vpack.c.b16 %v395, %v395
          %v403 = vpack.c.b16 %v396, %v396
          %v404 = vpack.c.b16 %v397, %v397
          %v405 = vpack.c.b16 %v398, %v398
          %413 = vst [vmem:[#allocation2] sm:$0xf] %v399
          %414 = vst [vmem:[#allocation2 + $0x4] sm:$0xf] %v400
          %415 = vst [vmem:[#allocation2 + $0x8] sm:$0xf] %v401
          %416 = vst [vmem:[#allocation2 + $0xc] sm:$0xf] %v402
          %417 = vst [vmem:[#allocation2 + $0x10] sm:$0xf] %v403
          %418 = vst [vmem:[#allocation2 + $0x14] sm:$0xf] %v404
          %419 = vst [vmem:[#allocation2 + $0x18] sm:$0xf] %v405
          %v420 = vpack.c.bf16 %v362, %v357
          %v421 = vpack.c.bf16 %v370, %v365
          %v422 = vpack.c.bf16 %v378, %v373
          %v423 = vpack.c.bf16 %v381, %v381
          %v428 = vunpack.c.l.b16 %v420
          %v429 = vunpack.c.h.b16 %v420
          %v430 = vunpack.c.l.b16 %v421
          %v431 = vunpack.c.h.b16 %v421
          %v432 = vunpack.c.l.b16 %v422
          %v433 = vunpack.c.h.b16 %v422
          %v434 = vunpack.c.l.b16 %v423
          %v435 = vpack.c.b16 %v428, %v428
          %v436 = vpack.c.b16 %v429, %v429
          %v437 = vpack.c.b16 %v430, %v430
          %v438 = vpack.c.b16 %v431, %v431
          %v439 = vpack.c.b16 %v432, %v432
          %v440 = vpack.c.b16 %v433, %v433
          %v441 = vpack.c.b16 %v434, %v434
          %449 = vst [vmem:[#allocation3] sm:$0xf] %v435
          %450 = vst [vmem:[#allocation3 + $0x4] sm:$0xf] %v436
          %451 = vst [vmem:[#allocation3 + $0x8] sm:$0xf] %v437
          %452 = vst [vmem:[#allocation3 + $0xc] sm:$0xf] %v438
          %453 = vst [vmem:[#allocation3 + $0x10] sm:$0xf] %v439
          %454 = vst [vmem:[#allocation3 + $0x14] sm:$0xf] %v440
          %455 = vst [vmem:[#allocation3 + $0x18] sm:$0xf] %v441
        $region40: #{tpu_custom_call.1} parent=31 // pred_fallthru
          _
        %v456 = vld [vmem:[%s181] sm:$0xff]
        %v457 = vld [vmem:[%s181 + $0x8] sm:$0xff]
        %v458 = vld [vmem:[%s181 + $0x10] sm:$0xff]
        %v459 = vld [vmem:[%s181 + $0x18] sm:$0xff]
        %v460 = vld [vmem:[%s181 + $0x20] sm:$0xff]
        %v461 = vld [vmem:[%s181 + $0x28] sm:$0xff]
        %v462 = vld [vmem:[%s181 + $0x30] sm:$0xff]
        %v463 = vpack.c.bf16 %v457, %v456
        %v464 = vpack.c.bf16 %v459, %v458
        %v465 = vpack.c.bf16 %v461, %v460
        %v466 = vpack.c.bf16 %v462, %v462
        %v467 = vld [vmem:[#allocation2] sm:$0xf]
        %v468 = vld [vmem:[#allocation2 + $0x4] sm:$0xf]
        %v469 = vld [vmem:[#allocation2 + $0x8] sm:$0xf]
        %v470 = vld [vmem:[#allocation2 + $0xc] sm:$0xf]
        %v471 = vld [vmem:[#allocation2 + $0x10] sm:$0xf]
        %v472 = vld [vmem:[#allocation2 + $0x14] sm:$0xf]
        %v473 = vld [vmem:[#allocation2 + $0x18] sm:$0xf]
        %474 = vxpose.xlu0.c.b16.start [1/8] %v463, 128
        %475 = vxpose.xlu0.c.b16.cont [2/8] %v464, 128
        %476 = vxpose.xlu0.c.b16.cont [3/8] %v465, 128
        %477 = vxpose.xlu0.c.b16.cont [4/8] %v466, 128
        %478 = vxpose.xlu0.c.b16.cont [5/8] 0, 128
        %479 = vxpose.xlu0.c.b16.cont [6/8] 0, 128
        %480 = vxpose.xlu0.c.b16.cont [7/8] 0, 128
        %481 = vxpose.xlu0.c.b16.end [8/8] 0, 128
        %v482 = vpop.trf.xlu0
        %v483 = vpop.trf.xlu0
        %v484 = vpop.trf.xlu0
        %v485 = vpop.trf.xlu0
        %v486 = vpop.trf.xlu0
        %v487 = vpop.trf.xlu0
        %v488 = vpop.trf.xlu0
        %v489 = vpop.trf.xlu0
        %v497 = vunpack.c.l.b16 %v467
        %v498 = vunpack.c.l.b16 %v468
        %v499 = vunpack.c.l.b16 %v469
        %v500 = vunpack.c.l.b16 %v470
        %v501 = vunpack.c.l.b16 %v471
        %v502 = vunpack.c.l.b16 %v472
        %v503 = vunpack.c.l.b16 %v473
        %v504 = vpack.c.b16 %v498, %v497
        %v505 = vpack.c.b16 %v500, %v499
        %v506 = vpack.c.b16 %v502, %v501
        %v507 = vpack.c.b16 %v503, %v503
        %vm511 = vcmask 457728
        %v513 = vsel %vm511, %v482, 0
        %v516 = vsel %vm511, %v483, 0
        %v519 = vsel %vm511, %v484, 0
        %v522 = vsel %vm511, %v485, 0
        %v525 = vsel %vm511, %v486, 0
        %v528 = vsel %vm511, %v487, 0
        %v531 = vsel %vm511, %v488, 0
        %v534 = vsel %vm511, %v489, 0
        %vm536 = vcmask 1043456
        %v538 = vsel %vm536, %v507, 0
        %540 = vmatprep.subr.bf16.mxu0 0
        %541 = vmatpush1.bf16.msra.mxu0 %v504
        %542 = vmatprep.subr.bf16.mxu0 0
        %543 = vmatpush1.bf16.msra.mxu0 %v505
        %544 = vmatprep.subr.bf16.mxu0 0
        %545 = vmatpush1.bf16.msra.mxu0 %v506
        %546 = vmatprep.subr.bf16.mxu0 0
        %547 = vmatpush1.bf16.msra.mxu0 %v538
        %548 = vmatprep.subr.bf16.mxu0 0
        %549 = vmatpush1.bf16.msra.mxu0 0
        %550 = vmatprep.subr.bf16.mxu0 0
        %551 = vmatpush1.bf16.msra.mxu0 0
        %552 = vmatprep.subr.bf16.mxu0 0
        %553 = vmatpush1.bf16.msra.mxu0 0
        %554 = vmatprep.subr.bf16.mxu0 0
        %555 = vmatpush1.bf16.msra.mxu0 0
        %556 = vmatprep.subr.bf16.mxu0 0
        %557 = vmatpush1.bf16.msra.mxu0 0
        %558 = vmatprep.subr.bf16.mxu0 0
        %559 = vmatpush1.bf16.msra.mxu0 0
        %560 = vmatprep.subr.bf16.mxu0 0
        %561 = vmatpush1.bf16.msra.mxu0 0
        %562 = vmatprep.subr.bf16.mxu0 0
        %563 = vmatpush1.bf16.msra.mxu0 0
        %564 = vmatprep.subr.bf16.mxu0 0
        %565 = vmatpush1.bf16.msra.mxu0 0
        %566 = vmatprep.subr.bf16.mxu0 0
        %567 = vmatpush1.bf16.msra.mxu0 0
        %568 = vmatprep.subr.bf16.mxu0 0
        %569 = vmatpush1.bf16.msra.mxu0 0
        %570 = vmatprep.subr.bf16.mxu0 0
        %571 = vmatpush1.bf16.msra.mxu0 0
        %572 = vmatprep.mubr.bf16.mxu0 0
        %573 = vmatmul.mubr.bf16.gmra.mrb[0].mxu0 %v513
        %v574 = vpop.f32.mrb[0].mxu0
        %v575 = vadd.f32 0.0, %v574
        %v576 = vpop.f32.mrb[0].mxu0
        %v577 = vpop.f32.mrb[0].mxu0
        %v578 = vadd.f32 0.0, %v577
        %v579 = vpop.f32.mrb[0].mxu0
        %580 = vmatprep.mubr.bf16.mxu0 0
        %581 = vmatmul.mubr.bf16.gmra.mrb[0].mxu0 %v516
        %v582 = vpop.f32.mrb[0].mxu0
        %v583 = vadd.f32 0.0, %v582
        %v584 = vpop.f32.mrb[0].mxu0
        %v585 = vpop.f32.mrb[0].mxu0
        %v586 = vadd.f32 0.0, %v585
        %v587 = vpop.f32.mrb[0].mxu0
        %588 = vmatprep.mubr.bf16.mxu0 0
        %589 = vmatmul.mubr.bf16.gmra.mrb[0].mxu0 %v519
        %v590 = vpop.f32.mrb[0].mxu0
        %v591 = vadd.f32 0.0, %v590
        %v592 = vpop.f32.mrb[0].mxu0
        %v593 = vpop.f32.mrb[0].mxu0
        %v594 = vadd.f32 0.0, %v593
        %v595 = vpop.f32.mrb[0].mxu0
        %596 = vmatprep.mubr.bf16.mxu0 0
        %597 = vmatmul.mubr.bf16.gmra.mrb[0].mxu0 %v522
        %v598 = vpop.f32.mrb[0].mxu0
        %v599 = vadd.f32 0.0, %v598
        %v600 = vpop.f32.mrb[0].mxu0
        %v601 = vpop.f32.mrb[0].mxu0
        %v602 = vadd.f32 0.0, %v601
        %v603 = vpop.f32.mrb[0].mxu0
        %604 = vmatprep.mubr.bf16.mxu0 0
        %605 = vmatmul.mubr.bf16.gmra.mrb[0].mxu0 %v525
        %v606 = vpop.f32.mrb[0].mxu0
        %v607 = vadd.f32 0.0, %v606
        %v608 = vpop.f32.mrb[0].mxu0
        %v609 = vpop.f32.mrb[0].mxu0
        %v610 = vadd.f32 0.0, %v609
        %v611 = vpop.f32.mrb[0].mxu0
        %612 = vmatprep.mubr.bf16.mxu0 0
        %613 = vmatmul.mubr.bf16.gmra.mrb[0].mxu0 %v528
        %v614 = vpop.f32.mrb[0].mxu0
        %v615 = vadd.f32 0.0, %v614
        %v616 = vpop.f32.mrb[0].mxu0
        %v617 = vpop.f32.mrb[0].mxu0
        %v618 = vadd.f32 0.0, %v617
        %v619 = vpop.f32.mrb[0].mxu0
        %620 = vmatprep.mubr.bf16.mxu0 0
        %621 = vmatmul.mubr.bf16.gmra.mrb[0].mxu0 %v531
        %v622 = vpop.f32.mrb[0].mxu0
        %v623 = vadd.f32 0.0, %v622
        %v624 = vpop.f32.mrb[0].mxu0
        %v625 = vpop.f32.mrb[0].mxu0
        %v626 = vadd.f32 0.0, %v625
        %v627 = vpop.f32.mrb[0].mxu0
        %628 = vmatprep.mubr.bf16.mxu0 0
        %629 = vmatmul.mubr.bf16.gmra.mrb[0].mxu0 %v534
        %v630 = vpop.f32.mrb[0].mxu0
        %v631 = vadd.f32 0.0, %v630
        %v632 = vpop.f32.mrb[0].mxu0
        %v633 = vpop.f32.mrb[0].mxu0
        %v634 = vadd.f32 0.0, %v633
        %v635 = vpop.f32.mrb[0].mxu0
        %636 = vdwg.mxu0
        %637 = vmax.xlane.f32.xlu0 %v575
        %v638 = vpop.xlane.xlu0 %637
        %639 = vmax.xlane.f32.xlu0 %v578
        %v640 = vpop.xlane.xlu0 %639
        %641 = vmax.xlane.f32.xlu0 %v583
        %v642 = vpop.xlane.xlu0 %641
        %643 = vmax.xlane.f32.xlu0 %v586
        %v644 = vpop.xlane.xlu0 %643
        %645 = vmax.xlane.f32.xlu0 %v591
        %v646 = vpop.xlane.xlu0 %645
        %647 = vmax.xlane.f32.xlu0 %v594
        %v648 = vpop.xlane.xlu0 %647
        %649 = vmax.xlane.f32.xlu0 %v599
        %v650 = vpop.xlane.xlu0 %649
        %651 = vmax.xlane.f32.xlu0 %v602
        %v652 = vpop.xlane.xlu0 %651
        %653 = vmax.xlane.f32.xlu0 %v607
        %v654 = vpop.xlane.xlu0 %653
        %655 = vmax.xlane.f32.xlu0 %v610
        %v656 = vpop.xlane.xlu0 %655
        %657 = vmax.xlane.f32.xlu0 %v615
        %v658 = vpop.xlane.xlu0 %657
        %659 = vmax.xlane.f32.xlu0 %v618
        %v660 = vpop.xlane.xlu0 %659
        %661 = vmax.xlane.f32.xlu0 %v623
        %v662 = vpop.xlane.xlu0 %661
        %663 = vmax.xlane.f32.xlu0 %v626
        %v664 = vpop.xlane.xlu0 %663
        %665 = vmax.xlane.f32.xlu0 %v631
        %v666 = vpop.xlane.xlu0 %665
        %667 = vmax.xlane.f32.xlu0 %v634
        %v668 = vpop.xlane.xlu0 %667
        %v669 = vsub.f32 %v575, %v638
        %v670 = vsub.f32 %v578, %v640
        %v671 = vsub.f32 %v583, %v642
        %v672 = vsub.f32 %v586, %v644
        %v673 = vsub.f32 %v591, %v646
        %v674 = vsub.f32 %v594, %v648
        %v675 = vsub.f32 %v599, %v650
        %v676 = vsub.f32 %v602, %v652
        %v677 = vsub.f32 %v607, %v654
        %v678 = vsub.f32 %v610, %v656
        %v679 = vsub.f32 %v615, %v658
        %v680 = vsub.f32 %v618, %v660
        %v681 = vsub.f32 %v623, %v662
        %v682 = vsub.f32 %v626, %v664
        %v683 = vsub.f32 %v631, %v666
        %v684 = vsub.f32 %v634, %v668
        %v685 = vmul.f32 %v669, 1.442695
        %v686 = vpow.pop %v685
        %v687 = vmul.f32 %v670, 1.442695
        %v688 = vpow.pop %v687
        %v689 = vmul.f32 %v671, 1.442695
        %v690 = vpow.pop %v689
        %v691 = vmul.f32 %v672, 1.442695
        %v692 = vpow.pop %v691
        %v693 = vmul.f32 %v673, 1.442695
        %v694 = vpow.pop %v693
        %v695 = vmul.f32 %v674, 1.442695
        %v696 = vpow.pop %v695
        %v697 = vmul.f32 %v675, 1.442695
        %v698 = vpow.pop %v697
        %v699 = vmul.f32 %v676, 1.442695
        %v700 = vpow.pop %v699
        %v701 = vmul.f32 %v677, 1.442695
        %v702 = vpow.pop %v701
        %v703 = vmul.f32 %v678, 1.442695
        %v704 = vpow.pop %v703
        %v705 = vmul.f32 %v679, 1.442695
        %v706 = vpow.pop %v705
        %v707 = vmul.f32 %v680, 1.442695
        %v708 = vpow.pop %v707
        %v709 = vmul.f32 %v681, 1.442695
        %v710 = vpow.pop %v709
        %v711 = vmul.f32 %v682, 1.442695
        %v712 = vpow.pop %v711
        %v713 = vmul.f32 %v683, 1.442695
        %v714 = vpow.pop %v713
        %v715 = vmul.f32 %v684, 1.442695
        %v716 = vpow.pop %v715
        %v717 = vpack.c.bf16 %v688, %v686
        %v718 = vpack.c.bf16 %v692, %v690
        %v719 = vpack.c.bf16 %v696, %v694
        %v720 = vpack.c.bf16 %v700, %v698
        %v721 = vpack.c.bf16 %v704, %v702
        %v722 = vpack.c.bf16 %v708, %v706
        %v723 = vpack.c.bf16 %v712, %v710
        %v724 = vpack.c.bf16 %v716, %v714
        %v725 = vld [vmem:[#allocation3] sm:$0xf]
        %v726 = vld [vmem:[#allocation3 + $0x4] sm:$0xf]
        %v727 = vld [vmem:[#allocation3 + $0x8] sm:$0xf]
        %v728 = vld [vmem:[#allocation3 + $0xc] sm:$0xf]
        %v729 = vld [vmem:[#allocation3 + $0x10] sm:$0xf]
        %v730 = vld [vmem:[#allocation3 + $0x14] sm:$0xf]
        %v731 = vld [vmem:[#allocation3 + $0x18] sm:$0xf]
        %v739 = vunpack.c.l.b16 %v725
        %v740 = vunpack.c.l.b16 %v726
        %v741 = vunpack.c.l.b16 %v727
        %v742 = vunpack.c.l.b16 %v728
        %v743 = vunpack.c.l.b16 %v729
        %v744 = vunpack.c.l.b16 %v730
        %v745 = vunpack.c.l.b16 %v731
        %v746 = vpack.c.b16 %v740, %v739
        %v747 = vpack.c.b16 %v742, %v741
        %v748 = vpack.c.b16 %v744, %v743
        %v749 = vpack.c.b16 %v745, %v745
        %754 = vmatprep.subr.bf16.mxu0 0
        %755 = vmatpush1.bf16.xpose.msra.mxu0 %v717
        %756 = vmatprep.subr.bf16.mxu0 0
        %757 = vmatpush1.bf16.xpose.msra.mxu0 %v718
        %758 = vmatprep.subr.bf16.mxu0 0
        %759 = vmatpush1.bf16.xpose.msra.mxu0 %v719
        %760 = vmatprep.subr.bf16.mxu0 0
        %761 = vmatpush1.bf16.xpose.msra.mxu0 %v720
        %762 = vmatprep.subr.bf16.mxu0 0
        %763 = vmatpush1.bf16.xpose.msra.mxu0 %v721
        %764 = vmatprep.subr.bf16.mxu0 0
        %765 = vmatpush1.bf16.xpose.msra.mxu0 %v722
        %766 = vmatprep.subr.bf16.mxu0 0
        %767 = vmatpush1.bf16.xpose.msra.mxu0 %v723
        %768 = vmatprep.subr.bf16.mxu0 0
        %769 = vmatpush1.bf16.xpose.msra.mxu0 %v724
        %770 = vmatprep.subr.bf16.mxu0 0
        %771 = vmatpush1.bf16.xpose.msra.mxu0 0
        %772 = vmatprep.subr.bf16.mxu0 0
        %773 = vmatpush1.bf16.xpose.msra.mxu0 0
        %774 = vmatprep.subr.bf16.mxu0 0
        %775 = vmatpush1.bf16.xpose.msra.mxu0 0
        %776 = vmatprep.subr.bf16.mxu0 0
        %777 = vmatpush1.bf16.xpose.msra.mxu0 0
        %778 = vmatprep.subr.bf16.mxu0 0
        %779 = vmatpush1.bf16.xpose.msra.mxu0 0
        %780 = vmatprep.subr.bf16.mxu0 0
        %781 = vmatpush1.bf16.xpose.msra.mxu0 0
        %782 = vmatprep.subr.bf16.mxu0 0
        %783 = vmatpush1.bf16.xpose.msra.mxu0 0
        %784 = vmatprep.subr.bf16.mxu0 0
        %785 = vmatpush1.bf16.xpose.msra.mxu0 0
        %786 = vmatprep.mubr.bf16.mxu0 0
        %787 = vmatmul.mubr.bf16.gmra.mrb[0].mxu0 %v746
        %v788 = vpop.f32.mrb[0].mxu0
        %v789 = vadd.f32 0.0, %v788
        %v790 = vpop.f32.mrb[0].mxu0
        %v791 = vpop.f32.mrb[0].mxu0
        %v792 = vadd.f32 0.0, %v791
        %v793 = vpop.f32.mrb[0].mxu0
        %794 = vmatprep.mubr.bf16.mxu0 0
        %795 = vmatmul.mubr.bf16.gmra.mrb[0].mxu0 %v747
        %v796 = vpop.f32.mrb[0].mxu0
        %v797 = vadd.f32 0.0, %v796
        %v798 = vpop.f32.mrb[0].mxu0
        %v799 = vpop.f32.mrb[0].mxu0
        %v800 = vadd.f32 0.0, %v799
        %v801 = vpop.f32.mrb[0].mxu0
        %802 = vmatprep.mubr.bf16.mxu0 0
        %803 = vmatmul.mubr.bf16.gmra.mrb[0].mxu0 %v748
        %v804 = vpop.f32.mrb[0].mxu0
        %v805 = vadd.f32 0.0, %v804
        %v806 = vpop.f32.mrb[0].mxu0
        %v807 = vpop.f32.mrb[0].mxu0
        %v808 = vadd.f32 0.0, %v807
        %v809 = vpop.f32.mrb[0].mxu0
        %810 = vmatprep.mubr.bf16.mxu0 0
        %811 = vmatmul.mubr.bf16.gmra.mrb[0].mxu0 %v749
        %v812 = vpop.f32.mrb[0].mxu0
        %v813 = vadd.f32 0.0, %v812
        %v814 = vpop.f32.mrb[0].mxu0
        %v815 = vpop.f32.mrb[0].mxu0
        %v816 = vpop.f32.mrb[0].mxu0
        %817 = vdwg.mxu0
        %s818 = sld [smem:[#allocation4]]
        %v819 = vstv %s818
        %v820 = vrcp.pop %v813
        %v821 = vmul.f32 %v819, %v820
        %v822 = vlaneseq
        %v823 = vshrl.u32 %v822, 7
        %v824 = vsub.s32 1, %v823
        %v825 = vrot.slane %v821, %v824
        %v826 = vmul.f32 %v789, %v825
        %v827 = vmul.f32 %v792, %v825
        %v828 = vmul.f32 %v797, %v825
        %v829 = vmul.f32 %v800, %v825
        %v830 = vmul.f32 %v805, %v825
        %v831 = vmul.f32 %v808, %v825
        %v832 = vmul.f32 %v813, %v825
        %v833 = vadd.f32 %v826, %v456
        %v834 = vadd.f32 %v827, %v457
        %v835 = vadd.f32 %v828, %v458
        %v836 = vadd.f32 %v829, %v459
        %v837 = vadd.f32 %v830, %v460
        %v838 = vadd.f32 %v831, %v461
        %v839 = vadd.f32 %v832, %v462
        %840 = vst [vmem:[%s203] sm:$0xff] %v833
        %841 = vst [vmem:[%s203 + $0x8] sm:$0xff] %v834
        %842 = vst [vmem:[%s203 + $0x10] sm:$0xff] %v835
        %843 = vst [vmem:[%s203 + $0x18] sm:$0xff] %v836
        %844 = vst [vmem:[%s203 + $0x20] sm:$0xff] %v837
        %845 = vst [vmem:[%s203 + $0x28] sm:$0xff] %v838
        %846 = vst [vmem:[%s203 + $0x30] sm:$0xff] %v839
        %s847 = sand.u32 %s111, 1
        %s848 = scalar_lea.sflag [#allocation7], %s847
        %s849 = sand.u32 %s111, 1
        %s850 = smul.addr %s849, 56
        %s851 = scalar_lea.vmem [#allocation8], %s850
        // Predicated region
        $region41: #{tpu_custom_call.1} parent=31 // pred_check
          %p852 = pneg %p121
        $region42: #{tpu_custom_call.1} parent=31 // pred_check_branch
          %854 = sbr.rel (%p852) target = $region44
        $region43: #{tpu_custom_call.1} parent=31 // pred_region
          %s856 = ssub.s32 896, 896
          %857 = vsyncadd %s848, %s856
          %s858 = smul.addr %s25, 7
          %s859 = sadd.s32 %s26, %s858
          %s860 = smul.addr %s859, 128
          %s861 = scalar_lea.hbm %s3, %s860
          %s862 = sshll.u32 %s851, 4
          %s863 = int_to_ptr.vmem [resolvable:$true] %s862
          %868 = dma.vmem_to_hbm [thread:$0]  %s863, 896, %s861, %s848, 128, 128, 8
        $region44: #{tpu_custom_call.1} parent=31 // pred_fallthru
          _
      $region32: #{tpu_custom_call.1} parent=5 // pred_fallthru
        _
      %p869 = scmp.le.s32.totalorder 2, %s16
      // Predicated region
      $region45: #{tpu_custom_call.1} parent=5 // pred_check
        %p870 = pneg %p869
      $region46: #{tpu_custom_call.1} parent=5 // pred_check_branch
        %872 = sbr.rel (%p870) target = $region48
      $region47: #{tpu_custom_call.1} parent=5 // pred_region
        %s873 = ssub.s32 %s16, 2
        // Predicated region
        $region49: #{tpu_custom_call.1} parent=47 // pred_check
          %p874 = pneg %p127
        $region50: #{tpu_custom_call.1} parent=47 // pred_check_branch
          %876 = sbr.rel (%p874) target = $region52
        $region51: #{tpu_custom_call.1} parent=47 // pred_region
          %s877 = sand.u32 %s112, 1
          %s878 = scalar_lea.sflag [#allocation7], %s877
          %s879 = sand.u32 %s112, 1
          %s880 = smul.addr %s879, 56
          %s881 = scalar_lea.vmem [#allocation8], %s880
          %882 = dma.done %s878, 896
        $region52: #{tpu_custom_call.1} parent=47 // pred_fallthru
          _
      $region48: #{tpu_custom_call.1} parent=5 // pred_fallthru
        _
    $region6: #{tpu_custom_call.1} parent=1 // loop_footer
      %s20 = sadd.s32 1, %s16
    $region7: #{tpu_custom_call.1} parent=1 // loop_footer_branch
      %15 = sbr.rel target = $region3
    $region8: #{tpu_custom_call.1} parent=1 // loop_exit
      _
    %883 = vsyncpa [#allocation6], 1
    %s884 = scalar_lea.sflag [#allocation6], 1
    %885 = vsyncpa %s884, 1
    %886 = vsyncpa [#allocation7], 1
    %s887 = scalar_lea.sflag [#allocation7], 1
    %888 = vsyncpa %s887, 1

</llo_original>
